<compile_context>
chip_gen: v7x
topology: tpu7x:2x2x1
jax: 0.10.0
libtpu: 0.0.40
codegen_flags: <defaults>
</compile_context>

<pallas_src>
import functools

import jax
import jax.numpy as jnp
from jax.experimental import pallas as pl
from jax.experimental.pallas import tpu as pltpu

ALPHA = 0.1        # initial-residual mixing coefficient (the 0.1 passed in forward)
NUM_LAYERS = 5


def _round_up(x, m):
    return (x + m - 1) // m * m


def _fused_encoder_kernel(a_ref, h0_ref, w_ref, b_ref, o_ref, h_ref, *, alpha):
    """One grid step == one GraphConvolution + ReLU layer.

    a_ref : (Np, Np)  normalized adjacency   (resident across grid)
    h0_ref: (Np, Dp)  original features      (resident across grid)
    w_ref : (Dp, Dp)  shared GCN weight      (resident across grid)
    b_ref : (1,  Dp)  shared GCN bias        (resident across grid)
    o_ref : (Np, Dp)  this layer's activation (leading layer dim squeezed)
    h_ref : (Np, Dp)  VMEM scratch carrying the current feature between layers
    """
    layer = pl.program_id(0)

    # Seed the feature carry with the original features on the first layer.
    @pl.when(layer == 0)
    def _():
        h_ref[...] = h0_ref[...]

    # Neighbor aggregation: [Np, Np] @ [Np, Dp]  (MXU)
    agg = jnp.dot(a_ref[...], h_ref[...], preferred_element_type=jnp.float32)
    # Initial-residual mix (GCNII style).
    support = (1.0 - alpha) * agg + alpha * h0_ref[...]
    # Linear transform + bias: [Np, Dp] @ [Dp, Dp] + [1, Dp]  (MXU + VPU)
    out = jnp.dot(support, w_ref[...], preferred_element_type=jnp.float32) + b_ref[...]
    # Fused ReLU.
    out = jnp.maximum(out, 0.0)

    # Carry for the next layer and per-layer output.
    # TODO(synk): nn.Dropout(0.2) implemented as identity (inference); add
    # pltpu.prng_seed / stateful_bernoulli masking here if training-mode
    # stochasticity is required.
    h_ref[...] = out
    o_ref[...] = out.astype(o_ref.dtype)


def drug_cell_encoder_fused(a_hat, h0, w, b, *, alpha=ALPHA, num_layers=NUM_LAYERS):
    """All `num_layers` GCN+ReLU layers in a single fused Pallas kernel.

    Returns a tuple of `num_layers` arrays of shape (N, D).
    """
    n, d = h0.shape
    n_pad = _round_up(n, 8)      # sublane multiple
    d_pad = _round_up(d, 128)    # lane-dense last dim (unmasked stores, full VPU width)

    # Zero-pad everything; padding is inert through the whole layer stack
    # (padded A_hat rows/cols, h0 rows/cols, W rows/cols and b lanes are all 0).
    a_p = jnp.zeros((n_pad, n_pad), jnp.float32).at[:n, :n].set(a_hat)
    h_p = jnp.zeros((n_pad, d_pad), jnp.float32).at[:n, :d].set(h0)
    w_p = jnp.zeros((d_pad, d_pad), jnp.float32).at[:d, :d].set(w)
    b_p = jnp.zeros((1, d_pad), jnp.float32).at[:, :d].set(b)

    flops = num_layers * (2 * n_pad * n_pad * d_pad + 2 * n_pad * d_pad * d_pad)
    bytes_accessed = 4 * (a_p.size + h_p.size + w_p.size + b_p.size
                          + num_layers * n_pad * d_pad)

    # TODO(synk): for large N the full-array (Np, Np) A_hat block must be tiled
    # over a reduction grid axis (or replaced by sparse edge-list aggregation via
    # PrefetchScalarGridSpec); at the small N used here the dense block is tiny.
    out = pl.pallas_call(
        functools.partial(_fused_encoder_kernel, alpha=alpha),
        out_shape=jax.ShapeDtypeStruct((num_layers, n_pad, d_pad), jnp.float32),
        grid_spec=pltpu.PrefetchScalarGridSpec(
            num_scalar_prefetch=0,
            grid=(num_layers,),
            in_specs=[
                pl.BlockSpec((n_pad, n_pad), lambda l: (0, 0)),   # A_hat   (resident)
                pl.BlockSpec((n_pad, d_pad), lambda l: (0, 0)),   # h0      (resident)
                pl.BlockSpec((d_pad, d_pad), lambda l: (0, 0)),   # W       (resident)
                pl.BlockSpec((1, d_pad), lambda l: (0, 0)),       # b       (resident)
            ],
            out_specs=pl.BlockSpec((None, n_pad, d_pad), lambda l: (l, 0, 0)),
            scratch_shapes=[pltpu.VMEM((n_pad, d_pad), jnp.float32)],
        ),
        compiler_params=pltpu.CompilerParams(
            # The 5-layer chain is strictly serial (each layer consumes the previous
            # layer's carry), so the grid axis must be "arbitrary".
            dimension_semantics=("arbitrary",)),
        cost_estimate=pl.CostEstimate(
            flops=flops, transcendentals=0, bytes_accessed=bytes_accessed),
    )(a_p, h_p, w_p, b_p)

    # Strip padding and unpack into the 5 per-layer activations.
    return tuple(out[l, :n, :d] for l in range(num_layers))


def build_normalized_adj(edge_idx, num_nodes):
    """A_hat = D^{-1/2} (A + I) D^{-1/2} from an edge list [2, E] (glue JAX, not hot path).

    Note: duplicate edges are deduped via .set(); if edge_idx already contains
    explicit self-loops the diagonal becomes 2.0 before normalization (standard
    "A + I" construction) — matches the assumed GraphConvolution reference.
    """
    src, dst = edge_idx[0], edge_idx[1]
    adj = jnp.zeros((num_nodes, num_nodes), jnp.float32)
    adj = adj.at[src, dst].set(1.0)
    adj = adj.at[dst, src].set(1.0)                      # symmetrize
    adj = adj + jnp.eye(num_nodes, dtype=jnp.float32)    # self-loops
    deg = jnp.sum(adj, axis=1)
    d_inv_sqrt = jnp.where(deg > 0, 1.0 / jnp.sqrt(deg), 0.0)
    return adj * d_inv_sqrt[:, None] * d_inv_sqrt[None, :]


def drug_cell_encoder_forward(drug_cell_pair_feature, edge_idx, w, b):
    """Mirrors Drug_cell_encoder.forward (Dropout(0.2) is identity — eval mode)."""
    n = drug_cell_pair_feature.shape[0]
    a_hat = build_normalized_adj(edge_idx, n)
    return drug_cell_encoder_fused(a_hat, drug_cell_pair_feature, w, b)


if __name__ == "__main__":
    key = jax.random.PRNGKey(0)
    k_feat, k_edge, k_w = jax.random.split(key, 3)

    N = 16      # number of drug-cell pair nodes
    INDIM = 32  # feature dimension (indim == outdim for GraphConvolution(indim, indim))
    E = 40      # number of edges

    # Deterministic synthetic inputs / parameters.
    drug_cell_pair_feature = jax.random.normal(k_feat, (N, INDIM), jnp.float32)
    edge_idx = jax.random.randint(k_edge, (2, E), 0, N, dtype=jnp.int32)

    # Glorot-style deterministic weight init for GraphConvolution(indim, indim).
    limit = (6.0 / (INDIM + INDIM)) ** 0.5
    w = jax.random.uniform(k_w, (INDIM, INDIM), jnp.float32, -limit, limit)
    b = jnp.zeros((1, INDIM), jnp.float32)

    outs = drug_cell_encoder_forward(drug_cell_pair_feature, edge_idx, w, b)
    outs = jax.block_until_ready(outs)

    assert len(outs) == 5
    for o in outs:
        assert o.shape == (N, INDIM)
        assert bool(jnp.all(jnp.isfinite(o)))
        assert bool(jnp.all(o >= 0.0))  # ReLU output

    # Cross-check the fused kernel against a plain-JAX reference of the same math.
    a_ref = build_normalized_adj(edge_idx, N)
    h = drug_cell_pair_feature
    refs = []
    for _ in range(5):
        sup = (1.0 - ALPHA) * (a_ref @ h) + ALPHA * drug_cell_pair_feature
        h = jnp.maximum(sup @ w + b, 0.0)
        refs.append(h)
    for o, r in zip(outs, refs):
        assert bool(jnp.all(jnp.abs(o - r) < 1e-4))

    print("KERNEL_OK")
</pallas_src>

<mosaic_0001>
module attributes {stable_mosaic.version = 11 : i64} {
  func.func @_fused_encoder_kernel(%arg0: i32, %arg1: memref<16x16xf32, #tpu.memory_space<vmem>>, %arg2: memref<16x128xf32, #tpu.memory_space<vmem>>, %arg3: memref<128x128xf32, #tpu.memory_space<vmem>>, %arg4: memref<1x128xf32, #tpu.memory_space<vmem>>, %arg5: memref<1x16x128xf32, #tpu.memory_space<vmem>>, %arg6: memref<16x128xf32, #tpu.memory_space<vmem>>) attributes {dimension_semantics = [#tpu.dimension_semantics<arbitrary>], iteration_bounds = array<i64: 5>, scalar_prefetch = 0 : i64, scratch_operands = 1 : i64, tpu.core_type = #tpu.core_type<tc>, window_params = [{pipeline_mode = #tpu.pipeline_mode<synchronous>, transform_indices = @transform_0, window_bounds = array<i64: 16, 16>}, {pipeline_mode = #tpu.pipeline_mode<synchronous>, transform_indices = @transform_1, window_bounds = array<i64: 16, 128>}, {pipeline_mode = #tpu.pipeline_mode<synchronous>, transform_indices = @transform_2, window_bounds = array<i64: 128, 128>}, {pipeline_mode = #tpu.pipeline_mode<synchronous>, transform_indices = @transform_3, window_bounds = array<i64: 1, 128>}, {transform_indices = @transform_4, window_bounds = array<i64: 1, 16, 128>}]} {
    %c0_i32 = arith.constant 0 : i32
    %0 = arith.cmpi eq, %arg0, %c0_i32 : i32
    %1 = arith.extui %0 : i1 to i32
    %c0_i32_0 = arith.constant 0 : i32
    %2 = arith.cmpi ne, %1, %c0_i32_0 : i32
    scf.if %2 {
      %c0_19 = arith.constant 0 : index
      %c0_20 = arith.constant 0 : index
      %23 = vector.load %arg2[%c0_19, %c0_20] : memref<16x128xf32, #tpu.memory_space<vmem>>, vector<16x128xf32>
      %c0_21 = arith.constant 0 : index
      %c0_22 = arith.constant 0 : index
      %24 = vector.load %arg6[%c0_21, %c0_22] : memref<16x128xf32, #tpu.memory_space<vmem>>, vector<16x128xf32>
      tpu.vector_store %arg6[%c0_21, %c0_22], %23 {strides = array<i32>} : memref<16x128xf32, #tpu.memory_space<vmem>>, vector<16x128xf32>,
    } else {
    }
    %c0 = arith.constant 0 : index
    %c0_1 = arith.constant 0 : index
    %3 = vector.load %arg1[%c0, %c0_1] : memref<16x16xf32, #tpu.memory_space<vmem>>, vector<16x16xf32>
    %c0_2 = arith.constant 0 : index
    %c0_3 = arith.constant 0 : index
    %4 = vector.load %arg6[%c0_2, %c0_3] : memref<16x128xf32, #tpu.memory_space<vmem>>, vector<16x128xf32>
    %cst = arith.constant dense<0.000000e+00> : vector<16x128xf32>
    %5 = tpu.matmul %3, %4, %cst {dimension_numbers = #tpu.dot_dimension_numbers<[1], [0], [0], [1], [0, 0, 1, 1], [], []>} : vector<16x16xf32>, vector<16x128xf32>, vector<16x128xf32> -> vector<16x128xf32>
    %cst_4 = arith.constant 0.899999976 : f32
    %6 = vector.broadcast %cst_4 : f32 to vector<16x128xf32>
    %7 = arith.mulf %6, %5 : vector<16x128xf32>
    %c0_5 = arith.constant 0 : index
    %c0_6 = arith.constant 0 : index
    %8 = vector.load %arg2[%c0_5, %c0_6] : memref<16x128xf32, #tpu.memory_space<vmem>>, vector<16x128xf32>
    %cst_7 = arith.constant 1.000000e-01 : f32
    %9 = vector.broadcast %cst_7 : f32 to vector<16x128xf32>
    %10 = arith.mulf %9, %8 : vector<16x128xf32>
    %11 = arith.addf %7, %10 : vector<16x128xf32>
    %c0_8 = arith.constant 0 : index
    %c0_9 = arith.constant 0 : index
    %12 = vector.load %arg3[%c0_8, %c0_9] : memref<128x128xf32, #tpu.memory_space<vmem>>, vector<128x128xf32>
    %cst_10 = arith.constant dense<0.000000e+00> : vector<16x128xf32>
    %13 = tpu.matmul %11, %12, %cst_10 {dimension_numbers = #tpu.dot_dimension_numbers<[1], [0], [0], [1], [0, 0, 1, 1], [], []>} : vector<16x128xf32>, vector<128x128xf32>, vector<16x128xf32> -> vector<16x128xf32>
    %c0_11 = arith.constant 0 : index
    %c0_12 = arith.constant 0 : index
    %14 = vector.load %arg4[%c0_11, %c0_12] : memref<1x128xf32, #tpu.memory_space<vmem>>, vector<1x128xf32>
    %15 = vector.broadcast %14 : vector<1x128xf32> to vector<16x128xf32>
    %16 = arith.addf %13, %15 : vector<16x128xf32>
    %cst_13 = arith.constant 0.000000e+00 : f32
    %17 = vector.broadcast %cst_13 : f32 to vector<16x128xf32>
    %18 = arith.maximumf %16, %17 : vector<16x128xf32>
    %c0_14 = arith.constant 0 : index
    %c0_15 = arith.constant 0 : index
    %19 = vector.load %arg6[%c0_14, %c0_15] : memref<16x128xf32, #tpu.memory_space<vmem>>, vector<16x128xf32>
    tpu.vector_store %arg6[%c0_14, %c0_15], %18 {strides = array<i32>} : memref<16x128xf32, #tpu.memory_space<vmem>>, vector<16x128xf32>,
    %c0_16 = arith.constant 0 : index
    %c0_17 = arith.constant 0 : index
    %c0_18 = arith.constant 0 : index
    %20 = vector.load %arg5[%c0_16, %c0_17, %c0_18] : memref<1x16x128xf32, #tpu.memory_space<vmem>>, vector<1x16x128xf32>
    %21 = vector.shape_cast %20 : vector<1x16x128xf32> to vector<16x128xf32>
    %22 = vector.shape_cast %18 : vector<16x128xf32> to vector<1x16x128xf32>
    tpu.vector_store %arg5[%c0_16, %c0_17, %c0_18], %22 {strides = array<i32>} : memref<1x16x128xf32, #tpu.memory_space<vmem>>, vector<1x16x128xf32>,
    return
  }
  func.func @transform_0(%arg0: i32) -> (i32, i32) {
    %c0_i32 = arith.constant 0 : i32
    %c0_i32_0 = arith.constant 0 : i32
    %c0_i32_1 = arith.constant 0 : i32
    return %c0_i32, %c0_i32_0 : i32, i32
  }
  func.func @transform_1(%arg0: i32) -> (i32, i32) {
    %c0_i32 = arith.constant 0 : i32
    %c0_i32_0 = arith.constant 0 : i32
    %c0_i32_1 = arith.constant 0 : i32
    return %c0_i32, %c0_i32_0 : i32, i32
  }
  func.func @transform_2(%arg0: i32) -> (i32, i32) {
    %c0_i32 = arith.constant 0 : i32
    %c0_i32_0 = arith.constant 0 : i32
    %c0_i32_1 = arith.constant 0 : i32
    return %c0_i32, %c0_i32_0 : i32, i32
  }
  func.func @transform_3(%arg0: i32) -> (i32, i32) {
    %c0_i32 = arith.constant 0 : i32
    %c0_i32_0 = arith.constant 0 : i32
    %c0_i32_1 = arith.constant 0 : i32
    return %c0_i32, %c0_i32_0 : i32, i32
  }
  func.func @transform_4(%arg0: i32) -> (i32, i32, i32) {
    %c0_i32 = arith.constant 0 : i32
    %c0_i32_0 = arith.constant 0 : i32
    %c0_i32_1 = arith.constant 0 : i32
    return %arg0, %c0_i32, %c0_i32_0 : i32, i32, i32
  }
}

</mosaic_0001>

<llo_original>
// kernel: tpu_custom_call.1
$region0: #{tpu_custom_call.1}
  #allocation0 [shape = 'u32[]', space=smem, size = 0x4, offset = 0x4, fixed_abs, tag = 'smem constant byte address 0x4 - core index']
  #allocation1 [shape = 'u32[144,128]{1,0:T(1,128)}', space=vmem, size = 0x12000, scoped, tag = 'internal scratch']
  #allocation2 [shape = 'f32[16,128]{1,0:T(8,128)}', space=vmem, size = 0x2000, scoped, tag = 'scratch operand']
  %s0 = inlined_call_operand.hbm [shape: f32[16,16], index: 0, kind: input, shape index: {}]
  %s1 = inlined_call_operand.hbm [shape: f32[16,128], index: 1, kind: input, shape index: {}]
  %s2 = inlined_call_operand.hbm [shape: f32[128,128], index: 2, kind: input, shape index: {}]
  %s3 = inlined_call_operand.vmem [shape: f32[1,128], index: 3, kind: input, shape index: {}]
  %s4 = inlined_call_operand.hbm [shape: f32[5,16,128], index: 4, kind: output, shape index: {}]
  %s5 = sld [smem:[#allocation0]]
  $region65: #{tpu_custom_call.1} parent=0
    _
  %s7 = ssub.s32 1, %s5
  %s8 = scalar_select 0, %s7, %s5
  $region1: #{tpu_custom_call.1} parent=0
    #allocation3 [shape = 'u8[8192]{0}', space=vmem, size = 0x2000, scoped, tag = 'input window, operand 0, single buffered']
    #allocation4 [shape = 's32[2]{0}', space=sflag, size = 0x8, scoped, tag = 'scoped memory for tpu_custom_call.1']
    #allocation5 [shape = 's32[2]{0}', space=sflag, size = 0x8, scoped, tag = 'scoped memory for tpu_custom_call.1']
    #allocation6 [shape = 'u8[8192]{0}', space=vmem, size = 0x2000, scoped, tag = 'input window, operand 1, single buffered']
    #allocation7 [shape = 's32[1]{0}', space=sflag, size = 0x4, scoped, tag = 'scoped memory for tpu_custom_call.1']
    #allocation8 [shape = 'u8[65536]{0}', space=vmem, size = 0x10000, scoped, tag = 'input window, operand 2, single buffered']
    #allocation9 [shape = 'u8[16384]{0}', space=vmem, size = 0x4000, scoped, tag = 'output window, operand 0']
    %9 = vsyncpa [#allocation4], 0
    %10 = vsyncpa [#allocation7], 0
    %11 = vsyncpa [#allocation5], 0
    %s12 = scalar_lea.sflag [#allocation5], 1
    %13 = vsyncpa %s12, 0
    loop: start=0, step=1, limit=7
    $region2: #{tpu_custom_call.1} parent=1 // loop_pre_header
      _
    $region3: #{tpu_custom_call.1} parent=1 // loop_header
      %s15 = sphi 0, %s19
      %p16 = scmp.ge.s32.totalorder %s15, 7
      %s23 = sphi 0, %s23
      %s25 = sphi 0, %s23
      %s26 = sphi 0, %s25
      %s40 = sphi 0, %s26
      %s44 = sphi 0, %s44
      %s46 = sphi 0, %s44
      %s47 = sphi 0, %s46
      %s61 = sphi 0, %s47
      %s65 = sphi 0, %s65
      %s67 = sphi 0, %s65
      %s68 = sphi 0, %s67
      %s82 = sphi 0, %s68
      %s86 = sphi 0, %s86
      %s88 = sphi 0, %s86
      %s89 = sphi 0, %s88
      %s103 = sphi 0, %s89
      %s109 = sphi 0, %s111
      %s112 = sphi 0, %s109
      %s113 = sphi 0, %s112
      %s129 = sphi 0, %s113
    $region4: #{tpu_custom_call.1} parent=1 // loop_header_branch
      %18 = sbr.rel (%p16) target = $region8
    $region5: #{tpu_custom_call.1} parent=1 // loop_body
      %s20 = ssub.s32 %s15, 1
      %s21 = ssub.s32 %s15, 2
      %s22 = sadd.s32 %s15, 1
      %s24 = sadd.s32 %s23, 1
      %p27 = scmp.eq.s32.totalorder %s15, 4
      %p28 = scmp.ne.s32.totalorder %s23, %s25
      %p29 = scmp.eq.s32.totalorder %s15, 0
      %p30 = por %p28, %p29
      %p31 = scmp.ne.s32.totalorder %s23, %s25
      %p32 = scmp.eq.s32.totalorder %s20, 4
      %p33 = por %p31, %p32
      %p34 = scmp.ne.s32.totalorder %s25, %s26
      %p35 = scmp.eq.s32.totalorder %s20, 0
      %p36 = por %p34, %p35
      %p37 = scmp.ne.s32.totalorder %s25, %s26
      %p38 = scmp.eq.s32.totalorder %s21, 4
      %p39 = por %p37, %p38
      %p41 = scmp.ne.s32.totalorder %s26, %s40
      %p42 = scmp.eq.s32.totalorder %s21, 0
      %p43 = por %p41, %p42
      %s45 = sadd.s32 %s44, 1
      %p48 = scmp.eq.s32.totalorder %s15, 4
      %p49 = scmp.ne.s32.totalorder %s44, %s46
      %p50 = scmp.eq.s32.totalorder %s15, 0
      %p51 = por %p49, %p50
      %p52 = scmp.ne.s32.totalorder %s44, %s46
      %p53 = scmp.eq.s32.totalorder %s20, 4
      %p54 = por %p52, %p53
      %p55 = scmp.ne.s32.totalorder %s46, %s47
      %p56 = scmp.eq.s32.totalorder %s20, 0
      %p57 = por %p55, %p56
      %p58 = scmp.ne.s32.totalorder %s46, %s47
      %p59 = scmp.eq.s32.totalorder %s21, 4
      %p60 = por %p58, %p59
      %p62 = scmp.ne.s32.totalorder %s47, %s61
      %p63 = scmp.eq.s32.totalorder %s21, 0
      %p64 = por %p62, %p63
      %s66 = sadd.s32 %s65, 1
      %p69 = scmp.eq.s32.totalorder %s15, 4
      %p70 = scmp.ne.s32.totalorder %s65, %s67
      %p71 = scmp.eq.s32.totalorder %s15, 0
      %p72 = por %p70, %p71
      %p73 = scmp.ne.s32.totalorder %s65, %s67
      %p74 = scmp.eq.s32.totalorder %s20, 4
      %p75 = por %p73, %p74
      %p76 = scmp.ne.s32.totalorder %s67, %s68
      %p77 = scmp.eq.s32.totalorder %s20, 0
      %p78 = por %p76, %p77
      %p79 = scmp.ne.s32.totalorder %s67, %s68
      %p80 = scmp.eq.s32.totalorder %s21, 4
      %p81 = por %p79, %p80
      %p83 = scmp.ne.s32.totalorder %s68, %s82
      %p84 = scmp.eq.s32.totalorder %s21, 0
      %p85 = por %p83, %p84
      %s87 = sadd.s32 %s86, 1
      %p90 = scmp.eq.s32.totalorder %s15, 4
      %p91 = scmp.ne.s32.totalorder %s86, %s88
      %p92 = scmp.eq.s32.totalorder %s15, 0
      %p93 = por %p91, %p92
      %p94 = scmp.ne.s32.totalorder %s86, %s88
      %p95 = scmp.eq.s32.totalorder %s20, 4
      %p96 = por %p94, %p95
      %p97 = scmp.ne.s32.totalorder %s88, %s89
      %p98 = scmp.eq.s32.totalorder %s20, 0
      %p99 = por %p97, %p98
      %p100 = scmp.ne.s32.totalorder %s88, %s89
      %p101 = scmp.eq.s32.totalorder %s21, 4
      %p102 = por %p100, %p101
      %p104 = scmp.ne.s32.totalorder %s89, %s103
      %p105 = scmp.eq.s32.totalorder %s21, 0
      %p106 = por %p104, %p105
      %s107 = ssub.s32 %s15, %s22
      %p108 = scmp.eq.s32.totalorder %s107, 0
      %s110 = sadd.s32 %s109, 1
      %s111 = scalar_select %p108, %s109, %s110
      %p114 = pneg %p108
      %p115 = scmp.eq.s32.totalorder %s15, 4
      %p116 = por %p114, %p115
      %p117 = scmp.ne.s32.totalorder %s109, %s112
      %p118 = scmp.eq.s32.totalorder %s15, 0
      %p119 = por %p117, %p118
      %p120 = scmp.ne.s32.totalorder %s109, %s112
      %p121 = scmp.eq.s32.totalorder %s20, 4
      %p122 = por %p120, %p121
      %p123 = scmp.ne.s32.totalorder %s112, %s113
      %p124 = scmp.eq.s32.totalorder %s20, 0
      %p125 = por %p123, %p124
      %p126 = scmp.ne.s32.totalorder %s112, %s113
      %p127 = scmp.eq.s32.totalorder %s21, 4
      %p128 = por %p126, %p127
      %p130 = scmp.ne.s32.totalorder %s113, %s129
      %p131 = scmp.eq.s32.totalorder %s21, 0
      %p132 = por %p130, %p131
      %p133 = scmp.le.s32.totalorder 1, %s15
      %p134 = scmp.lt.s32.totalorder %s15, 6
      %p135 = pnand %p133, %p134
      %p136 = pneg %p135
      // Predicated region
      $region9: #{tpu_custom_call.1} parent=5 // pred_check
        _
      $region10: #{tpu_custom_call.1} parent=5 // pred_check_branch
        %138 = sbr.rel (%p135) target = $region12
      $region11: #{tpu_custom_call.1} parent=5 // pred_region
        %s139 = ssub.s32 %s15, 1
        // Predicated region
        $region13: #{tpu_custom_call.1} parent=11 // pred_check
          %p140 = pneg %p36
        $region14: #{tpu_custom_call.1} parent=11 // pred_check_branch
          %142 = sbr.rel (%p140) target = $region16
        $region15: #{tpu_custom_call.1} parent=11 // pred_region
          %s144 = ssub.s32 256, 256
          %145 = vsyncadd [#allocation4], %s144
          %s146 = sshll.u32 [#allocation3], 4
          %s147 = int_to_ptr.vmem [resolvable:$true] %s146
          %152 = dma.hbm_to_vmem [thread:$0]  %s0, 256, %s147, [#allocation4], 128, 128, 8
        $region16: #{tpu_custom_call.1} parent=11 // pred_fallthru
          _
        // Predicated region
        $region17: #{tpu_custom_call.1} parent=11 // pred_check
          %p153 = pneg %p57
        $region18: #{tpu_custom_call.1} parent=11 // pred_check_branch
          %155 = sbr.rel (%p153) target = $region20
        $region19: #{tpu_custom_call.1} parent=11 // pred_region
          %s157 = ssub.s32 256, 256
          %158 = vsyncadd [#allocation7], %s157
          %s159 = sshll.u32 [#allocation6], 4
          %s160 = int_to_ptr.vmem [resolvable:$true] %s159
          %165 = dma.hbm_to_vmem [thread:$0]  %s1, 256, %s160, [#allocation7], 128, 128, 8
        $region20: #{tpu_custom_call.1} parent=11 // pred_fallthru
          _
        // Predicated region
        $region21: #{tpu_custom_call.1} parent=11 // pred_check
          %p166 = pneg %p78
        $region22: #{tpu_custom_call.1} parent=11 // pred_check_branch
          %168 = sbr.rel (%p166) target = $region24
        $region23: #{tpu_custom_call.1} parent=11 // pred_region
          %s170 = ssub.s32 2048, 2048
          %171 = vsyncadd [#allocation7], %s170
          %s172 = sshll.u32 [#allocation8], 4
          %s173 = int_to_ptr.vmem [resolvable:$true] %s172
          %178 = dma.hbm_to_vmem [thread:$0]  %s2, 2048, %s173, [#allocation7], 128, 128, 8
        $region24: #{tpu_custom_call.1} parent=11 // pred_fallthru
          _
        // Predicated region
        $region25: #{tpu_custom_call.1} parent=11 // pred_check
          %p179 = pneg %p99
        $region26: #{tpu_custom_call.1} parent=11 // pred_check_branch
          %181 = sbr.rel (%p179) target = $region28
        $region27: #{tpu_custom_call.1} parent=11 // pred_region
          _
        $region28: #{tpu_custom_call.1} parent=11 // pred_fallthru
          _
      $region12: #{tpu_custom_call.1} parent=5 // pred_fallthru
        _
      %p182 = scmp.lt.s32.totalorder %s15, 5
      // Predicated region
      $region29: #{tpu_custom_call.1} parent=5 // pred_check
        %p183 = pneg %p182
      $region30: #{tpu_custom_call.1} parent=5 // pred_check_branch
        %185 = sbr.rel (%p183) target = $region32
      $region31: #{tpu_custom_call.1} parent=5 // pred_region
        _
      $region32: #{tpu_custom_call.1} parent=5 // pred_fallthru
        _
      %p186 = scmp.le.s32.totalorder 1, %s15
      %p187 = scmp.lt.s32.totalorder %s15, 6
      %p188 = pnand %p186, %p187
      %p189 = pneg %p188
      // Predicated region
      $region33: #{tpu_custom_call.1} parent=5 // pred_check
        _
      $region34: #{tpu_custom_call.1} parent=5 // pred_check_branch
        %191 = sbr.rel (%p188) target = $region36
      $region35: #{tpu_custom_call.1} parent=5 // pred_region
        %s192 = ssub.s32 %s15, 1
        // Predicated region
        $region37: #{tpu_custom_call.1} parent=35 // pred_check
          %p193 = pneg %p36
        $region38: #{tpu_custom_call.1} parent=35 // pred_check_branch
          %195 = sbr.rel (%p193) target = $region40
        $region39: #{tpu_custom_call.1} parent=35 // pred_region
          %196 = dma.done [#allocation4], 256
        $region40: #{tpu_custom_call.1} parent=35 // pred_fallthru
          _
        // Predicated region
        $region41: #{tpu_custom_call.1} parent=35 // pred_check
          %p197 = pneg %p57
        $region42: #{tpu_custom_call.1} parent=35 // pred_check_branch
          %199 = sbr.rel (%p197) target = $region44
        $region43: #{tpu_custom_call.1} parent=35 // pred_region
          %200 = dma.done [#allocation7], 256
        $region44: #{tpu_custom_call.1} parent=35 // pred_fallthru
          _
        // Predicated region
        $region45: #{tpu_custom_call.1} parent=35 // pred_check
          %p201 = pneg %p78
        $region46: #{tpu_custom_call.1} parent=35 // pred_check_branch
          %203 = sbr.rel (%p201) target = $region48
        $region47: #{tpu_custom_call.1} parent=35 // pred_region
          %204 = dma.done [#allocation7], 2048
        $region48: #{tpu_custom_call.1} parent=35 // pred_fallthru
          _
        %p205 = pneg %p36
        %p206 = pneg %p33
        %p207 = pneg %p57
        %p208 = pneg %p54
        %p209 = pneg %p78
        %p210 = pneg %p75
        %p211 = pneg %p99
        %p212 = pneg %p96
        %p213 = pneg %p125
        %p214 = pneg %p122
        %s215 = sand.u32 %s112, 1
        %s216 = scalar_lea.sflag [#allocation5], %s215
        %s217 = sand.u32 %s112, 1
        %s218 = smul.addr %s217, 16
        %s219 = scalar_lea.vmem [#allocation9], %s218
        %p220 = scmp.eq.s32.totalorder %s20, 0
        // Predicated region
        $region49: #{tpu_custom_call.1} parent=35 // pred_check
          %p221 = pneg %p220
        $region50: #{tpu_custom_call.1} parent=35 // pred_check_branch
          %223 = sbr.rel (%p221) target = $region52
        $region51: #{tpu_custom_call.1} parent=35 // pred_region
          %v224 = vld [vmem:[#allocation6] sm:$0xff]
          %v225 = vld [vmem:[#allocation6 + $0x8] sm:$0xff]
          %226 = vst [vmem:[#allocation2] sm:$0xff] %v224
          %227 = vst [vmem:[#allocation2 + $0x8] sm:$0xff] %v225
        $region52: #{tpu_custom_call.1} parent=35 // pred_fallthru
          _
        %v228 = vld [vmem:[#allocation3] sm:$0xff]
        %v229 = vld [vmem:[#allocation3 + $0x8] sm:$0xff]
        %v230 = vld [vmem:[#allocation2] sm:$0xff]
        %v231 = vld [vmem:[#allocation2 + $0x8] sm:$0xff]
        %vm232 = vcmask 130048
        %v234 = vsel %vm232, %v228, 0
        %v237 = vsel %vm232, %v229, 0
        %239 = vmatprep.subr.mxu0 0.0
        %240 = vmatpush1.msra.mxu0 %v230
        %241 = vmatprep.subr.mxu0 0.0
        %242 = vmatpush1.msra.mxu0 %v231
        %243 = vmatprep.subr.mxu0 0.0
        %244 = vmatpush1.msra.mxu0 0.0
        %245 = vmatprep.subr.mxu0 0.0
        %246 = vmatpush1.msra.mxu0 0.0
        %247 = vmatprep.subr.mxu0 0.0
        %248 = vmatpush1.msra.mxu0 0.0
        %249 = vmatprep.subr.mxu0 0.0
        %250 = vmatpush1.msra.mxu0 0.0
        %251 = vmatprep.subr.mxu0 0.0
        %252 = vmatpush1.msra.mxu0 0.0
        %253 = vmatprep.subr.mxu0 0.0
        %254 = vmatpush1.msra.mxu0 0.0
        %255 = vmatprep.subr.mxu0 0.0
        %256 = vmatpush1.msra.mxu0 0.0
        %257 = vmatprep.subr.mxu0 0.0
        %258 = vmatpush1.msra.mxu0 0.0
        %259 = vmatprep.subr.mxu0 0.0
        %260 = vmatpush1.msra.mxu0 0.0
        %261 = vmatprep.subr.mxu0 0.0
        %262 = vmatpush1.msra.mxu0 0.0
        %263 = vmatprep.subr.mxu0 0.0
        %264 = vmatpush1.msra.mxu0 0.0
        %265 = vmatprep.subr.mxu0 0.0
        %266 = vmatpush1.msra.mxu0 0.0
        %267 = vmatprep.subr.mxu0 0.0
        %268 = vmatpush1.msra.mxu0 0.0
        %269 = vmatprep.subr.mxu0 0.0
        %270 = vmatpush1.msra.mxu0 0.0
        %271 = vmatprep.subr.mxu0 0.0
        %272 = vmatpush1.msra.mxu0 0.0
        %273 = vmatprep.subr.mxu0 0.0
        %274 = vmatpush1.msra.mxu0 0.0
        %275 = vmatprep.subr.mxu0 0.0
        %276 = vmatpush1.msra.mxu0 0.0
        %277 = vmatprep.subr.mxu0 0.0
        %278 = vmatpush1.msra.mxu0 0.0
        %279 = vmatprep.subr.mxu0 0.0
        %280 = vmatpush1.msra.mxu0 0.0
        %281 = vmatprep.subr.mxu0 0.0
        %282 = vmatpush1.msra.mxu0 0.0
        %283 = vmatprep.subr.mxu0 0.0
        %284 = vmatpush1.msra.mxu0 0.0
        %285 = vmatprep.subr.mxu0 0.0
        %286 = vmatpush1.msra.mxu0 0.0
        %287 = vmatprep.subr.mxu0 0.0
        %288 = vmatpush1.msra.mxu0 0.0
        %289 = vmatprep.subr.mxu0 0.0
        %290 = vmatpush1.msra.mxu0 0.0
        %291 = vmatprep.subr.mxu0 0.0
        %292 = vmatpush1.msra.mxu0 0.0
        %293 = vmatprep.subr.mxu0 0.0
        %294 = vmatpush1.msra.mxu0 0.0
        %295 = vmatprep.subr.mxu0 0.0
        %296 = vmatpush1.msra.mxu0 0.0
        %297 = vmatprep.subr.mxu0 0.0
        %298 = vmatpush1.msra.mxu0 0.0
        %299 = vmatprep.subr.mxu0 0.0
        %300 = vmatpush1.msra.mxu0 0.0
        %301 = vmatprep.subr.mxu0 0.0
        %302 = vmatpush1.msra.mxu0 0.0
        %303 = vmatprep.mubr.f32.mxu0 0.0
        %304 = vmatmul.mubr.f32.gmra.mrb[0].mxu0 %v234
        %v305 = vpop.f32.mrb[0].mxu0
        %v306 = vadd.f32 0.0, %v305
        %v307 = vpop.f32.mrb[0].mxu0
        %308 = vmatprep.mubr.f32.mxu0 0.0
        %309 = vmatmul.mubr.f32.gmra.mrb[0].mxu0 %v237
        %v310 = vpop.f32.mrb[0].mxu0
        %v311 = vadd.f32 0.0, %v310
        %v312 = vpop.f32.mrb[0].mxu0
        %313 = vdwg.mxu0
        %v314 = vmul.f32 %v306, 0.9
        %v315 = vmul.f32 %v311, 0.9
        %v316 = vld [vmem:[#allocation6] sm:$0xff]
        %v317 = vld [vmem:[#allocation6 + $0x8] sm:$0xff]
        %v318 = vmul.f32 %v316, 0.1
        %v319 = vmul.f32 %v317, 0.1
        %v320 = vadd.f32 %v314, %v318
        %v321 = vadd.f32 %v315, %v319
        %v322 = vld [vmem:[#allocation8] sm:$0xff]
        %v323 = vld [vmem:[#allocation8 + $0x8] sm:$0xff]
        %v324 = vld [vmem:[#allocation8 + $0x10] sm:$0xff]
        %v325 = vld [vmem:[#allocation8 + $0x18] sm:$0xff]
        %v326 = vld [vmem:[#allocation8 + $0x20] sm:$0xff]
        %v327 = vld [vmem:[#allocation8 + $0x28] sm:$0xff]
        %v328 = vld [vmem:[#allocation8 + $0x30] sm:$0xff]
        %v329 = vld [vmem:[#allocation8 + $0x38] sm:$0xff]
        %v330 = vld [vmem:[#allocation8 + $0x40] sm:$0xff]
        %v331 = vld [vmem:[#allocation8 + $0x48] sm:$0xff]
        %v332 = vld [vmem:[#allocation8 + $0x50] sm:$0xff]
        %v333 = vld [vmem:[#allocation8 + $0x58] sm:$0xff]
        %v334 = vld [vmem:[#allocation8 + $0x60] sm:$0xff]
        %v335 = vld [vmem:[#allocation8 + $0x68] sm:$0xff]
        %v336 = vld [vmem:[#allocation8 + $0x70] sm:$0xff]
        %v337 = vld [vmem:[#allocation8 + $0x78] sm:$0xff]
        %v338 = vld [vmem:[%s3] sm:$0x1]
        %v340 = vlaneseq
        %v341 = vshrl.u32 %v340, 7
        %v342 = vsub.s32 0, %v341
        %v343 = vrot.slane %v338, %v342
        %345 = vmatprep.subr.mxu0 0.0
        %346 = vmatpush1.msra.mxu0 %v322
        %347 = vmatprep.subr.mxu0 0.0
        %348 = vmatpush1.msra.mxu0 %v323
        %349 = vmatprep.subr.mxu0 0.0
        %350 = vmatpush1.msra.mxu0 %v324
        %351 = vmatprep.subr.mxu0 0.0
        %352 = vmatpush1.msra.mxu0 %v325
        %353 = vmatprep.subr.mxu0 0.0
        %354 = vmatpush1.msra.mxu0 %v326
        %355 = vmatprep.subr.mxu0 0.0
        %356 = vmatpush1.msra.mxu0 %v327
        %357 = vmatprep.subr.mxu0 0.0
        %358 = vmatpush1.msra.mxu0 %v328
        %359 = vmatprep.subr.mxu0 0.0
        %360 = vmatpush1.msra.mxu0 %v329
        %361 = vmatprep.subr.mxu0 0.0
        %362 = vmatpush1.msra.mxu0 %v330
        %363 = vmatprep.subr.mxu0 0.0
        %364 = vmatpush1.msra.mxu0 %v331
        %365 = vmatprep.subr.mxu0 0.0
        %366 = vmatpush1.msra.mxu0 %v332
        %367 = vmatprep.subr.mxu0 0.0
        %368 = vmatpush1.msra.mxu0 %v333
        %369 = vmatprep.subr.mxu0 0.0
        %370 = vmatpush1.msra.mxu0 %v334
        %371 = vmatprep.subr.mxu0 0.0
        %372 = vmatpush1.msra.mxu0 %v335
        %373 = vmatprep.subr.mxu0 0.0
        %374 = vmatpush1.msra.mxu0 %v336
        %375 = vmatprep.subr.mxu0 0.0
        %376 = vmatpush1.msra.mxu0 %v337
        %377 = vmatprep.subr.mxu0 0.0
        %378 = vmatpush1.msra.mxu0 0.0
        %379 = vmatprep.subr.mxu0 0.0
        %380 = vmatpush1.msra.mxu0 0.0
        %381 = vmatprep.subr.mxu0 0.0
        %382 = vmatpush1.msra.mxu0 0.0
        %383 = vmatprep.subr.mxu0 0.0
        %384 = vmatpush1.msra.mxu0 0.0
        %385 = vmatprep.subr.mxu0 0.0
        %386 = vmatpush1.msra.mxu0 0.0
        %387 = vmatprep.subr.mxu0 0.0
        %388 = vmatpush1.msra.mxu0 0.0
        %389 = vmatprep.subr.mxu0 0.0
        %390 = vmatpush1.msra.mxu0 0.0
        %391 = vmatprep.subr.mxu0 0.0
        %392 = vmatpush1.msra.mxu0 0.0
        %393 = vmatprep.subr.mxu0 0.0
        %394 = vmatpush1.msra.mxu0 0.0
        %395 = vmatprep.subr.mxu0 0.0
        %396 = vmatpush1.msra.mxu0 0.0
        %397 = vmatprep.subr.mxu0 0.0
        %398 = vmatpush1.msra.mxu0 0.0
        %399 = vmatprep.subr.mxu0 0.0
        %400 = vmatpush1.msra.mxu0 0.0
        %401 = vmatprep.subr.mxu0 0.0
        %402 = vmatpush1.msra.mxu0 0.0
        %403 = vmatprep.subr.mxu0 0.0
        %404 = vmatpush1.msra.mxu0 0.0
        %405 = vmatprep.subr.mxu0 0.0
        %406 = vmatpush1.msra.mxu0 0.0
        %407 = vmatprep.subr.mxu0 0.0
        %408 = vmatpush1.msra.mxu0 0.0
        %409 = vmatprep.mubr.f32.mxu0 0.0
        %410 = vmatmul.mubr.f32.gmra.mrb[0].mxu0 %v320
        %v411 = vpop.f32.mrb[0].mxu0
        %v412 = vadd.f32 %v343, %v411
        %v413 = vpop.f32.mrb[0].mxu0
        %414 = vmatprep.mubr.f32.mxu0 0.0
        %415 = vmatmul.mubr.f32.gmra.mrb[0].mxu0 %v321
        %v416 = vpop.f32.mrb[0].mxu0
        %v417 = vadd.f32 %v343, %v416
        %v418 = vpop.f32.mrb[0].mxu0
        %419 = vdwg.mxu0
        %v420 = vmax.f32 %v412, 0.0
        %v421 = vmax.f32 %v417, 0.0
        %422 = vst [vmem:[#allocation2] sm:$0xff] %v420
        %423 = vst [vmem:[#allocation2 + $0x8] sm:$0xff] %v421
        %424 = vst [vmem:[%s219] sm:$0xff] %v420
        %425 = vst [vmem:[%s219 + $0x8] sm:$0xff] %v421
        %s426 = sand.u32 %s112, 1
        %s427 = scalar_lea.sflag [#allocation5], %s426
        %s428 = sand.u32 %s112, 1
        %s429 = smul.addr %s428, 16
        %s430 = scalar_lea.vmem [#allocation9], %s429
        // Predicated region
        $region53: #{tpu_custom_call.1} parent=35 // pred_check
          %p431 = pneg %p122
        $region54: #{tpu_custom_call.1} parent=35 // pred_check_branch
          %433 = sbr.rel (%p431) target = $region56
        $region55: #{tpu_custom_call.1} parent=35 // pred_region
          %s435 = ssub.s32 256, 256
          %436 = vsyncadd %s427, %s435
          %s437 = smul.addr %s20, 2
          %s438 = smul.addr %s437, 128
          %s439 = scalar_lea.hbm %s4, %s438
          %s440 = sshll.u32 %s430, 4
          %s441 = int_to_ptr.vmem [resolvable:$true] %s440
          %446 = dma.vmem_to_hbm [thread:$0]  %s441, 256, %s439, %s427, 128, 128, 8
        $region56: #{tpu_custom_call.1} parent=35 // pred_fallthru
          _
      $region36: #{tpu_custom_call.1} parent=5 // pred_fallthru
        _
      %p447 = scmp.le.s32.totalorder 2, %s15
      // Predicated region
      $region57: #{tpu_custom_call.1} parent=5 // pred_check
        %p448 = pneg %p447
      $region58: #{tpu_custom_call.1} parent=5 // pred_check_branch
        %450 = sbr.rel (%p448) target = $region60
      $region59: #{tpu_custom_call.1} parent=5 // pred_region
        %s451 = ssub.s32 %s15, 2
        // Predicated region
        $region61: #{tpu_custom_call.1} parent=59 // pred_check
          %p452 = pneg %p128
        $region62: #{tpu_custom_call.1} parent=59 // pred_check_branch
          %454 = sbr.rel (%p452) target = $region64
        $region63: #{tpu_custom_call.1} parent=59 // pred_region
          %s455 = sand.u32 %s113, 1
          %s456 = scalar_lea.sflag [#allocation5], %s455
          %s457 = sand.u32 %s113, 1
          %s458 = smul.addr %s457, 16
          %s459 = scalar_lea.vmem [#allocation9], %s458
          %460 = dma.done %s456, 256
        $region64: #{tpu_custom_call.1} parent=59 // pred_fallthru
          _
      $region60: #{tpu_custom_call.1} parent=5 // pred_fallthru
        _
    $region6: #{tpu_custom_call.1} parent=1 // loop_footer
      %s19 = sadd.s32 1, %s15
    $region7: #{tpu_custom_call.1} parent=1 // loop_footer_branch
      %14 = sbr.rel target = $region3
    $region8: #{tpu_custom_call.1} parent=1 // loop_exit
      _
    %461 = vsyncpa [#allocation4], 1
    %s462 = scalar_lea.sflag [#allocation4], 1
    %463 = vsyncpa %s462, 1
    %464 = vsyncpa [#allocation7], 1
    %465 = vsyncpa [#allocation5], 1
    %s466 = scalar_lea.sflag [#allocation5], 1
    %467 = vsyncpa %s466, 1

</llo_original>
